<compile_context>
chip_gen: v6e
topology: v6e:2x2x1
jax: 0.10.0
libtpu: 0.0.40
codegen_flags: <defaults>
</compile_context>

<pallas_src>
import jax
import jax.numpy as jnp
from jax.experimental import pallas as pl
from jax.experimental.pallas import tpu as pltpu


def _matmul_bias_relu_kernel(p_ref, w_ref, b_ref, o_ref):
    # p_ref: (TM, Kpad)   bf16 im2col patch tile (lane-dense)
    # w_ref: (Kpad, Co_pad) bf16 fused conv weights (grid-resident)
    # b_ref: (1, Co_pad)  f32 fused bias (grid-resident)
    # o_ref: (TM, Co_pad) output tile (lane-dense, unmasked store)
    acc = jnp.dot(p_ref[...], w_ref[...], preferred_element_type=jnp.float32)
    acc = acc + b_ref[...]                       # single broadcast bias add, f32
    # TODO(synk): nn.Dropout is identity in an inference forward; omitted here.
    o_ref[...] = jnp.maximum(acc, 0.0).astype(o_ref.dtype)   # ReLU


def _pick_row_tile(rows_total):
    """Big tiles for pipeline/MXU efficiency, but >=2 grid steps when possible (v7x)."""
    if rows_total >= 1024:
        return 512
    half = -(-rows_total // 2)
    return max(8, ((half + 7) // 8) * 8)


def convolutional_net_forward(x, params, cnn_kernel_size, *,
                              compute_dtype=jnp.bfloat16,
                              out_dtype=jnp.float32,
                              row_tile=None):
    """x: [B, image_width, image_width, num_channels] -> [B, W*W, 3*num_conv_channels]."""
    B, D1, D2, Cin = x.shape
    assert D1 == D2, "module assumes square images"
    D = D1
    ksizes = (1, 5, int(cnn_kernel_size))
    for k in ksizes:
        assert k % 2 == 1, "only odd kernel sizes keep torch's 'same' spatial size"
    Kmax = max(ksizes)
    P = Kmax // 2
    Cout = params["w1"].shape[0]
    C3 = 3 * Cout
    Co_pad = ((C3 + 127) // 128) * 128           # lane-dense output channel count
    Kc = Kmax * Kmax * Cin
    Kpad = ((Kc + 127) // 128) * 128             # MXU-friendly contraction depth

    # --- Fuse the three convs into one (Kpad, Co_pad) weight and one (1, Co_pad) bias.
    # torch's transpose(1,3) pairs kernel-W with input dim 1 and kernel-H with input dim 2,
    # so OIHW -> (Kw, Kh, Cin, Cout); smaller kernels are zero-padded to Kmax, centered.
    w_parts, b_parts = [], []
    for name, K in zip(("1", "2", "3"), ksizes):
        w = params["w" + name].astype(jnp.float32)             # (Cout, Cin, Kh, Kw)
        wt = jnp.transpose(w, (3, 2, 1, 0))                    # (Kw, Kh, Cin, Cout)
        off = P - K // 2
        wt = jnp.pad(wt, ((off, off), (off, off), (0, 0), (0, 0)))
        w_parts.append(wt)
        b_parts.append(params["b" + name].astype(jnp.float32))
    wf = jnp.concatenate(w_parts, axis=-1)                     # (Kmax, Kmax, Cin, 3*Cout)
    wf = jnp.pad(wf, ((0, 0), (0, 0), (0, 0), (0, Co_pad - C3)))
    wf = wf.reshape(Kc, Co_pad)
    wf = jnp.pad(wf, ((0, Kpad - Kc), (0, 0))).astype(compute_dtype)
    bf = jnp.pad(jnp.concatenate(b_parts), (0, Co_pad - C3)).reshape(1, Co_pad)

    # --- Wrapper-side im2col: lane-dense (rows, Kpad) patch matrix in bf16.
    # Column ordering (a, bb, cin) matches the fused weight row ordering (kw, kh, cin).
    xp = jnp.pad(x.astype(jnp.float32), ((0, 0), (P, P), (P, P), (0, 0)))
    taps = [xp[:, a:a + D, bb:bb + D, :]
            for a in range(Kmax) for bb in range(Kmax)]
    patches = jnp.concatenate(taps, axis=-1).reshape(B * D * D, Kc)

    rows_total = B * D * D
    if row_tile is None:
        row_tile = _pick_row_tile(rows_total)
    grid_m = pl.cdiv(rows_total, row_tile)
    rows_pad = grid_m * row_tile
    patches = jnp.pad(patches, ((0, rows_pad - rows_total), (0, Kpad - Kc)))
    patches = patches.astype(compute_dtype)

    out_padded = pl.pallas_call(
        _matmul_bias_relu_kernel,
        out_shape=jax.ShapeDtypeStruct((rows_pad, Co_pad), out_dtype),
        grid=(grid_m,),
        in_specs=[
            pl.BlockSpec((row_tile, Kpad), lambda i: (i, 0)),
            pl.BlockSpec((Kpad, Co_pad), lambda i: (0, 0)),
            pl.BlockSpec((1, Co_pad), lambda i: (0, 0)),
        ],
        out_specs=pl.BlockSpec((row_tile, Co_pad), lambda i: (i, 0)),
        compiler_params=pltpu.CompilerParams(
            # row-tile axis is fully independent -> "parallel" (shards across v7x's 2 TCs
            # since grid_m >= 2 whenever rows_total >= 16).
            dimension_semantics=("parallel",)),
    )(patches, wf, bf)

    return out_padded[:rows_total, :C3].reshape(B, D * D, C3)


def init_params(key, num_channels, num_conv_channels, cnn_kernel_size):
    """Deterministic params matching nn.Conv2d shapes (OIHW weights, per-conv bias)."""
    keys = jax.random.split(key, 6)

    def conv_init(kw, kb, K):
        fan_in = num_channels * K * K
        bound = 1.0 / (fan_in ** 0.5)
        w = jax.random.uniform(kw, (num_conv_channels, num_channels, K, K),
                               jnp.float32, -bound, bound)
        b = jax.random.uniform(kb, (num_conv_channels,), jnp.float32, -bound, bound)
        return w, b

    w1, b1 = conv_init(keys[0], keys[1], 1)
    w2, b2 = conv_init(keys[2], keys[3], 5)
    w3, b3 = conv_init(keys[4], keys[5], cnn_kernel_size)
    return {"w1": w1, "b1": b1, "w2": w2, "b2": b2, "w3": w3, "b3": b3}


def reference_forward(x, params, cnn_kernel_size):
    """Literal pure-JAX transcription of the PyTorch forward (f32)."""
    xc = jnp.transpose(x, (0, 3, 2, 1)).astype(jnp.float32)    # torch .transpose(1, 3)

    def conv(w, b, pad):
        y = jax.lax.conv_general_dilated(
            xc, w.astype(jnp.float32), (1, 1), [(pad, pad), (pad, pad)],
            dimension_numbers=("NCHW", "OIHW", "NCHW"))
        return y + b.astype(jnp.float32).reshape(1, -1, 1, 1)

    c1 = conv(params["w1"], params["b1"], 0)
    c2 = conv(params["w2"], params["b2"], 2)
    c3 = conv(params["w3"], params["b3"], cnn_kernel_size // 2)
    feats = jnp.concatenate([c1, c2, c3], axis=1)              # (B, 3*Cout, H, W)
    feats = jnp.transpose(feats, (0, 3, 2, 1))                 # torch .transpose(1, 3)
    feats = jnp.maximum(feats, 0.0)                            # ReLU; dropout = identity
    return feats.reshape(x.shape[0], -1, feats.shape[-1])


if __name__ == "__main__":
    batch_size = 2
    image_width = 8
    num_channels = 4
    num_conv_channels = 8
    cnn_kernel_size = 7

    key = jax.random.PRNGKey(0)
    kx, kp = jax.random.split(key)
    x = jax.random.normal(kx, (batch_size, image_width, image_width, num_channels),
                          dtype=jnp.float32)
    params = init_params(kp, num_channels, num_conv_channels, cnn_kernel_size)

    out = convolutional_net_forward(x, params, cnn_kernel_size)
    out = jax.block_until_ready(out)
    assert out.shape == (batch_size, image_width * image_width, 3 * num_conv_channels)

    # (1) Tight check vs. a reference whose x / weights are rounded to bf16 exactly like the
    #     kernel's MXU operands (f32 accumulation) -> only accumulation-order noise remains.
    x_r = x.astype(jnp.bfloat16).astype(jnp.float32)
    params_r = {k: (v.astype(jnp.bfloat16).astype(jnp.float32) if k.startswith("w") else v)
                for k, v in params.items()}
    ref_matched = reference_forward(x_r, params_r, cnn_kernel_size)
    assert jnp.allclose(out, ref_matched, atol=1e-4, rtol=1e-4), \
        "mismatch vs bf16-operand reference"

    # (2) Sanity check vs. the full-f32 PyTorch-equivalent reference (bf16 rounding tolerance).
    ref_f32 = reference_forward(x, params, cnn_kernel_size)
    assert jnp.allclose(out, ref_f32, atol=5e-2, rtol=5e-2), \
        "mismatch vs f32 reference beyond bf16 tolerance"

    print("KERNEL_OK")
</pallas_src>

<mosaic_0001>
module attributes {stable_mosaic.version = 11 : i64} {
  func.func @_matmul_bias_relu_kernel(%arg0: i32, %arg1: memref<64x256xbf16, #tpu.memory_space<vmem>>, %arg2: memref<256x128xbf16, #tpu.memory_space<vmem>>, %arg3: memref<1x128xf32, #tpu.memory_space<vmem>>, %arg4: memref<64x128xf32, #tpu.memory_space<vmem>>) attributes {dimension_semantics = [#tpu.dimension_semantics<parallel>], iteration_bounds = array<i64: 2>, scalar_prefetch = 0 : i64, scratch_operands = 0 : i64, tpu.core_type = #tpu.core_type<tc>, window_params = [{transform_indices = @transform_0, window_bounds = array<i64: 64, 256>}, {pipeline_mode = #tpu.pipeline_mode<synchronous>, transform_indices = @transform_1, window_bounds = array<i64: 256, 128>}, {pipeline_mode = #tpu.pipeline_mode<synchronous>, transform_indices = @transform_2, window_bounds = array<i64: 1, 128>}, {transform_indices = @transform_3, window_bounds = array<i64: 64, 128>}]} {
    %c0 = arith.constant 0 : index
    %c0_0 = arith.constant 0 : index
    %0 = vector.load %arg1[%c0, %c0_0] : memref<64x256xbf16, #tpu.memory_space<vmem>>, vector<64x256xbf16>
    %c0_1 = arith.constant 0 : index
    %c0_2 = arith.constant 0 : index
    %1 = vector.load %arg2[%c0_1, %c0_2] : memref<256x128xbf16, #tpu.memory_space<vmem>>, vector<256x128xbf16>
    %cst = arith.constant dense<0.000000e+00> : vector<64x128xf32>
    %2 = tpu.matmul %0, %1, %cst {dimension_numbers = #tpu.dot_dimension_numbers<[1], [0], [0], [1], [0, 0, 1, 1], [], []>} : vector<64x256xbf16>, vector<256x128xbf16>, vector<64x128xf32> -> vector<64x128xf32>
    %c0_3 = arith.constant 0 : index
    %c0_4 = arith.constant 0 : index
    %3 = vector.load %arg3[%c0_3, %c0_4] : memref<1x128xf32, #tpu.memory_space<vmem>>, vector<1x128xf32>
    %4 = vector.broadcast %3 : vector<1x128xf32> to vector<64x128xf32>
    %5 = arith.addf %2, %4 : vector<64x128xf32>
    %cst_5 = arith.constant 0.000000e+00 : f32
    %6 = vector.broadcast %cst_5 : f32 to vector<64x128xf32>
    %7 = arith.maximumf %5, %6 : vector<64x128xf32>
    %c0_6 = arith.constant 0 : index
    %c0_7 = arith.constant 0 : index
    %8 = vector.load %arg4[%c0_6, %c0_7] : memref<64x128xf32, #tpu.memory_space<vmem>>, vector<64x128xf32>
    tpu.vector_store %arg4[%c0_6, %c0_7], %7 {strides = array<i32>} : memref<64x128xf32, #tpu.memory_space<vmem>>, vector<64x128xf32>,
    return
  }
  func.func @transform_0(%arg0: i32) -> (i32, i32) {
    %c0_i32 = arith.constant 0 : i32
    %c0_i32_0 = arith.constant 0 : i32
    return %arg0, %c0_i32 : i32, i32
  }
  func.func @transform_1(%arg0: i32) -> (i32, i32) {
    %c0_i32 = arith.constant 0 : i32
    %c0_i32_0 = arith.constant 0 : i32
    %c0_i32_1 = arith.constant 0 : i32
    return %c0_i32, %c0_i32_0 : i32, i32
  }
  func.func @transform_2(%arg0: i32) -> (i32, i32) {
    %c0_i32 = arith.constant 0 : i32
    %c0_i32_0 = arith.constant 0 : i32
    %c0_i32_1 = arith.constant 0 : i32
    return %c0_i32, %c0_i32_0 : i32, i32
  }
  func.func @transform_3(%arg0: i32) -> (i32, i32) {
    %c0_i32 = arith.constant 0 : i32
    %c0_i32_0 = arith.constant 0 : i32
    return %arg0, %c0_i32 : i32, i32
  }
}

</mosaic_0001>

<llo_original>
// kernel: tpu_custom_call.1
$region0: #{tpu_custom_call.1}
  #allocation0 [shape = 'u32[]', space=smem, size = 0x4, offset = 0x4, fixed_abs, tag = 'smem constant byte address 0x4 - core index']
  #allocation1 [shape = 'u32[144,128]{1,0:T(1,128)}', space=vmem, size = 0x12000, scoped, tag = 'internal scratch']
  %s0 = inlined_call_operand.hbm [shape: bf16[128,256], index: 0, kind: input, shape index: {}]
  %s1 = inlined_call_operand.hbm [shape: bf16[256,128], index: 1, kind: input, shape index: {}]
  %s2 = inlined_call_operand.vmem [shape: f32[1,128], index: 2, kind: input, shape index: {}]
  %s3 = inlined_call_operand.hbm [shape: f32[128,128], index: 3, kind: output, shape index: {}]
  %s4 = sld [smem:[#allocation0]]
  $region53: #{tpu_custom_call.1} parent=0
    _
  %s6 = ssub.s32 1, %s4
  %s7 = scalar_select 0, %s6, %s4
  $region1: #{tpu_custom_call.1} parent=0
    #allocation2 [shape = 'u8[65536]{0}', space=vmem, size = 0x10000, scoped, tag = 'input window, operand 0']
    #allocation3 [shape = 's32[2]{0}', space=sflag, size = 0x8, scoped, tag = 'scoped memory for tpu_custom_call.1']
    #allocation4 [shape = 's32[2]{0}', space=sflag, size = 0x8, scoped, tag = 'scoped memory for tpu_custom_call.1']
    #allocation5 [shape = 'u8[65536]{0}', space=vmem, size = 0x10000, scoped, tag = 'input window, operand 1, single buffered']
    #allocation6 [shape = 's32[1]{0}', space=sflag, size = 0x4, scoped, tag = 'scoped memory for tpu_custom_call.1']
    #allocation7 [shape = 'u8[65536]{0}', space=vmem, size = 0x10000, scoped, tag = 'output window, operand 0']
    %8 = vsyncpa [#allocation3], 0
    %s9 = scalar_lea.sflag [#allocation3], 1
    %10 = vsyncpa %s9, 0
    %11 = vsyncpa [#allocation6], 0
    %12 = vsyncpa [#allocation4], 0
    %s13 = scalar_lea.sflag [#allocation4], 1
    %14 = vsyncpa %s13, 0
    loop: start=0, step=1, limit=4
    $region2: #{tpu_custom_call.1} parent=1 // loop_pre_header
      _
    $region3: #{tpu_custom_call.1} parent=1 // loop_header
      %s16 = sphi 0, %s20
      %p17 = scmp.ge.s32.totalorder %s16, 4
      %s26 = sphi 0, %s28
      %s29 = sphi 0, %s26
      %s30 = sphi 0, %s29
      %s46 = sphi 0, %s30
      %s50 = sphi 0, %s50
      %s52 = sphi 0, %s50
      %s53 = sphi 0, %s52
      %s67 = sphi 0, %s53
      %s71 = sphi 0, %s71
      %s73 = sphi 0, %s71
      %s74 = sphi 0, %s73
      %s88 = sphi 0, %s74
      %s94 = sphi 0, %s96
      %s97 = sphi 0, %s94
      %s98 = sphi 0, %s97
      %s114 = sphi 0, %s98
    $region4: #{tpu_custom_call.1} parent=1 // loop_header_branch
      %19 = sbr.rel (%p17) target = $region8
    $region5: #{tpu_custom_call.1} parent=1 // loop_body
      %s21 = ssub.s32 %s16, 1
      %s22 = ssub.s32 %s16, 2
      %s23 = sadd.s32 %s16, 1
      %s24 = ssub.s32 %s16, %s23
      %p25 = scmp.eq.s32.totalorder %s24, 0
      %s27 = sadd.s32 %s26, 1
      %s28 = scalar_select %p25, %s26, %s27
      %p31 = pneg %p25
      %p32 = scmp.eq.s32.totalorder %s16, 1
      %p33 = por %p31, %p32
      %p34 = scmp.ne.s32.totalorder %s26, %s29
      %p35 = scmp.eq.s32.totalorder %s16, 0
      %p36 = por %p34, %p35
      %p37 = scmp.ne.s32.totalorder %s26, %s29
      %p38 = scmp.eq.s32.totalorder %s21, 1
      %p39 = por %p37, %p38
      %p40 = scmp.ne.s32.totalorder %s29, %s30
      %p41 = scmp.eq.s32.totalorder %s21, 0
      %p42 = por %p40, %p41
      %p43 = scmp.ne.s32.totalorder %s29, %s30
      %p44 = scmp.eq.s32.totalorder %s22, 1
      %p45 = por %p43, %p44
      %p47 = scmp.ne.s32.totalorder %s30, %s46
      %p48 = scmp.eq.s32.totalorder %s22, 0
      %p49 = por %p47, %p48
      %s51 = sadd.s32 %s50, 1
      %p54 = scmp.eq.s32.totalorder %s16, 1
      %p55 = scmp.ne.s32.totalorder %s50, %s52
      %p56 = scmp.eq.s32.totalorder %s16, 0
      %p57 = por %p55, %p56
      %p58 = scmp.ne.s32.totalorder %s50, %s52
      %p59 = scmp.eq.s32.totalorder %s21, 1
      %p60 = por %p58, %p59
      %p61 = scmp.ne.s32.totalorder %s52, %s53
      %p62 = scmp.eq.s32.totalorder %s21, 0
      %p63 = por %p61, %p62
      %p64 = scmp.ne.s32.totalorder %s52, %s53
      %p65 = scmp.eq.s32.totalorder %s22, 1
      %p66 = por %p64, %p65
      %p68 = scmp.ne.s32.totalorder %s53, %s67
      %p69 = scmp.eq.s32.totalorder %s22, 0
      %p70 = por %p68, %p69
      %s72 = sadd.s32 %s71, 1
      %p75 = scmp.eq.s32.totalorder %s16, 1
      %p76 = scmp.ne.s32.totalorder %s71, %s73
      %p77 = scmp.eq.s32.totalorder %s16, 0
      %p78 = por %p76, %p77
      %p79 = scmp.ne.s32.totalorder %s71, %s73
      %p80 = scmp.eq.s32.totalorder %s21, 1
      %p81 = por %p79, %p80
      %p82 = scmp.ne.s32.totalorder %s73, %s74
      %p83 = scmp.eq.s32.totalorder %s21, 0
      %p84 = por %p82, %p83
      %p85 = scmp.ne.s32.totalorder %s73, %s74
      %p86 = scmp.eq.s32.totalorder %s22, 1
      %p87 = por %p85, %p86
      %p89 = scmp.ne.s32.totalorder %s74, %s88
      %p90 = scmp.eq.s32.totalorder %s22, 0
      %p91 = por %p89, %p90
      %s92 = ssub.s32 %s16, %s23
      %p93 = scmp.eq.s32.totalorder %s92, 0
      %s95 = sadd.s32 %s94, 1
      %s96 = scalar_select %p93, %s94, %s95
      %p99 = pneg %p93
      %p100 = scmp.eq.s32.totalorder %s16, 1
      %p101 = por %p99, %p100
      %p102 = scmp.ne.s32.totalorder %s94, %s97
      %p103 = scmp.eq.s32.totalorder %s16, 0
      %p104 = por %p102, %p103
      %p105 = scmp.ne.s32.totalorder %s94, %s97
      %p106 = scmp.eq.s32.totalorder %s21, 1
      %p107 = por %p105, %p106
      %p108 = scmp.ne.s32.totalorder %s97, %s98
      %p109 = scmp.eq.s32.totalorder %s21, 0
      %p110 = por %p108, %p109
      %p111 = scmp.ne.s32.totalorder %s97, %s98
      %p112 = scmp.eq.s32.totalorder %s22, 1
      %p113 = por %p111, %p112
      %p115 = scmp.ne.s32.totalorder %s98, %s114
      %p116 = scmp.eq.s32.totalorder %s22, 0
      %p117 = por %p115, %p116
      %p118 = scmp.le.s32.totalorder 1, %s16
      %p119 = scmp.lt.s32.totalorder %s16, 3
      %p120 = pnand %p118, %p119
      %p121 = pneg %p120
      // Predicated region
      $region9: #{tpu_custom_call.1} parent=5 // pred_check
        _
      $region10: #{tpu_custom_call.1} parent=5 // pred_check_branch
        %123 = sbr.rel (%p120) target = $region12
      $region11: #{tpu_custom_call.1} parent=5 // pred_region
        %s124 = ssub.s32 %s16, 1
        // Predicated region
        $region13: #{tpu_custom_call.1} parent=11 // pred_check
          %p125 = pneg %p63
        $region14: #{tpu_custom_call.1} parent=11 // pred_check_branch
          %127 = sbr.rel (%p125) target = $region16
        $region15: #{tpu_custom_call.1} parent=11 // pred_region
          %s129 = ssub.s32 2048, 2048
          %130 = vsyncadd [#allocation6], %s129
          %s131 = sshll.u32 [#allocation5], 4
          %s132 = int_to_ptr.vmem [resolvable:$true] %s131
          %137 = dma.hbm_to_vmem [thread:$0]  %s1, 2048, %s132, [#allocation6], 64, 64, 4
        $region16: #{tpu_custom_call.1} parent=11 // pred_fallthru
          _
        // Predicated region
        $region17: #{tpu_custom_call.1} parent=11 // pred_check
          %p138 = pneg %p84
        $region18: #{tpu_custom_call.1} parent=11 // pred_check_branch
          %140 = sbr.rel (%p138) target = $region20
        $region19: #{tpu_custom_call.1} parent=11 // pred_region
          _
        $region20: #{tpu_custom_call.1} parent=11 // pred_fallthru
          _
      $region12: #{tpu_custom_call.1} parent=5 // pred_fallthru
        _
      %p141 = scmp.lt.s32.totalorder %s16, 2
      // Predicated region
      $region21: #{tpu_custom_call.1} parent=5 // pred_check
        %p142 = pneg %p141
      $region22: #{tpu_custom_call.1} parent=5 // pred_check_branch
        %144 = sbr.rel (%p142) target = $region24
      $region23: #{tpu_custom_call.1} parent=5 // pred_region
        // Predicated region
        $region25: #{tpu_custom_call.1} parent=23 // pred_check
          %p145 = pneg %p36
        $region26: #{tpu_custom_call.1} parent=23 // pred_check_branch
          %147 = sbr.rel (%p145) target = $region28
        $region27: #{tpu_custom_call.1} parent=23 // pred_region
          %s148 = sand.u32 %s26, 1
          %s149 = scalar_lea.sflag [#allocation3], %s148
          %s150 = sand.u32 %s26, 1
          %s151 = smul.addr %s150, 64
          %s152 = scalar_lea.vmem [#allocation2], %s151
          %s153 = smul.u32 8, %s16
          %s155 = ssub.s32 1024, 1024
          %156 = vsyncadd %s149, %s155
          %s157 = smul.addr %s153, 2
          %s158 = smul.addr %s157, 64
          %s159 = scalar_lea.hbm %s0, %s158
          %s160 = sshll.u32 %s152, 4
          %s161 = int_to_ptr.vmem [resolvable:$true] %s160
          %166 = dma.hbm_to_vmem [thread:$0]  %s159, 1024, %s161, %s149, 128, 128, 8
        $region28: #{tpu_custom_call.1} parent=23 // pred_fallthru
          _
      $region24: #{tpu_custom_call.1} parent=5 // pred_fallthru
        _
      %p167 = scmp.le.s32.totalorder 1, %s16
      %p168 = scmp.lt.s32.totalorder %s16, 3
      %p169 = pnand %p167, %p168
      %p170 = pneg %p169
      // Predicated region
      $region29: #{tpu_custom_call.1} parent=5 // pred_check
        _
      $region30: #{tpu_custom_call.1} parent=5 // pred_check_branch
        %172 = sbr.rel (%p169) target = $region32
      $region31: #{tpu_custom_call.1} parent=5 // pred_region
        %s173 = ssub.s32 %s16, 1
        %s174 = sand.u32 %s29, 1
        %s175 = scalar_lea.sflag [#allocation3], %s174
        %s176 = sand.u32 %s29, 1
        %s177 = smul.addr %s176, 64
        %s178 = scalar_lea.vmem [#allocation2], %s177
        // Predicated region
        $region33: #{tpu_custom_call.1} parent=31 // pred_check
          %p179 = pneg %p42
        $region34: #{tpu_custom_call.1} parent=31 // pred_check_branch
          %181 = sbr.rel (%p179) target = $region36
        $region35: #{tpu_custom_call.1} parent=31 // pred_region
          %182 = dma.done %s175, 1024
        $region36: #{tpu_custom_call.1} parent=31 // pred_fallthru
          _
        // Predicated region
        $region37: #{tpu_custom_call.1} parent=31 // pred_check
          %p183 = pneg %p63
        $region38: #{tpu_custom_call.1} parent=31 // pred_check_branch
          %185 = sbr.rel (%p183) target = $region40
        $region39: #{tpu_custom_call.1} parent=31 // pred_region
          %186 = dma.done [#allocation6], 2048
        $region40: #{tpu_custom_call.1} parent=31 // pred_fallthru
          _
        %s187 = sand.u32 %s29, 1
        %s188 = scalar_lea.sflag [#allocation3], %s187
        %s189 = sand.u32 %s29, 1
        %s190 = smul.addr %s189, 64
        %s191 = scalar_lea.vmem [#allocation2], %s190
        %p192 = pneg %p42
        %p193 = pneg %p39
        %p194 = pneg %p63
        %p195 = pneg %p60
        %p196 = pneg %p84
        %p197 = pneg %p81
        %p198 = pneg %p110
        %p199 = pneg %p107
        %s200 = sand.u32 %s97, 1
        %s201 = scalar_lea.sflag [#allocation4], %s200
        %s202 = sand.u32 %s97, 1
        %s203 = smul.addr %s202, 64
        %s204 = scalar_lea.vmem [#allocation7], %s203
        %s205 = smul.u32 8, %s21
        %s206 = smul.u32 8, %s21
        %v208 = vld [vmem:[%s178] sm:$0xff]
        %v209 = vld [vmem:[%s178 + $0x8] sm:$0xff]
        %v210 = vld [vmem:[%s178 + $0x10] sm:$0xff]
        %v211 = vld [vmem:[%s178 + $0x18] sm:$0xff]
        %v212 = vld [vmem:[%s178 + $0x20] sm:$0xff]
        %v213 = vld [vmem:[%s178 + $0x28] sm:$0xff]
        %v214 = vld [vmem:[%s178 + $0x30] sm:$0xff]
        %v215 = vld [vmem:[%s178 + $0x38] sm:$0xff]
        %v216 = vld [vmem:[#allocation5] sm:$0xf]
        %v217 = vld [vmem:[#allocation5 + $0x4] sm:$0xf]
        %v218 = vld [vmem:[#allocation5 + $0x8] sm:$0xf]
        %v219 = vld [vmem:[#allocation5 + $0xc] sm:$0xf]
        %v220 = vld [vmem:[#allocation5 + $0x10] sm:$0xf]
        %v221 = vld [vmem:[#allocation5 + $0x14] sm:$0xf]
        %v222 = vld [vmem:[#allocation5 + $0x18] sm:$0xf]
        %v223 = vld [vmem:[#allocation5 + $0x1c] sm:$0xf]
        %v224 = vld [vmem:[#allocation5 + $0x20] sm:$0xf]
        %v225 = vld [vmem:[#allocation5 + $0x24] sm:$0xf]
        %v226 = vld [vmem:[#allocation5 + $0x28] sm:$0xf]
        %v227 = vld [vmem:[#allocation5 + $0x2c] sm:$0xf]
        %v228 = vld [vmem:[#allocation5 + $0x30] sm:$0xf]
        %v229 = vld [vmem:[#allocation5 + $0x34] sm:$0xf]
        %v230 = vld [vmem:[#allocation5 + $0x38] sm:$0xf]
        %v231 = vld [vmem:[#allocation5 + $0x3c] sm:$0xf]
        %v232 = vld [vmem:[#allocation5 + $0x40] sm:$0xf]
        %v233 = vld [vmem:[#allocation5 + $0x44] sm:$0xf]
        %v234 = vld [vmem:[#allocation5 + $0x48] sm:$0xf]
        %v235 = vld [vmem:[#allocation5 + $0x4c] sm:$0xf]
        %v236 = vld [vmem:[#allocation5 + $0x50] sm:$0xf]
        %v237 = vld [vmem:[#allocation5 + $0x54] sm:$0xf]
        %v238 = vld [vmem:[#allocation5 + $0x58] sm:$0xf]
        %v239 = vld [vmem:[#allocation5 + $0x5c] sm:$0xf]
        %v240 = vld [vmem:[#allocation5 + $0x60] sm:$0xf]
        %v241 = vld [vmem:[#allocation5 + $0x64] sm:$0xf]
        %v242 = vld [vmem:[#allocation5 + $0x68] sm:$0xf]
        %v243 = vld [vmem:[#allocation5 + $0x6c] sm:$0xf]
        %v244 = vld [vmem:[#allocation5 + $0x70] sm:$0xf]
        %v245 = vld [vmem:[#allocation5 + $0x74] sm:$0xf]
        %v246 = vld [vmem:[#allocation5 + $0x78] sm:$0xf]
        %v247 = vld [vmem:[#allocation5 + $0x7c] sm:$0xf]
        %v248 = vld [vmem:[%s2] sm:$0x1]
        %v250 = vlaneseq
        %v251 = vshrl.u32 %v250, 7
        %v252 = vsub.s32 0, %v251
        %v253 = vrot.slane %v248, %v252
        %v263 = vunpack.c.l.b16 %v208
        %v264 = vunpack.c.h.b16 %v208
        %v265 = vunpack.c.l.b16 %v209
        %v266 = vunpack.c.h.b16 %v209
        %v267 = vunpack.c.l.b16 %v210
        %v268 = vunpack.c.h.b16 %v210
        %v269 = vunpack.c.l.b16 %v211
        %v270 = vunpack.c.h.b16 %v211
        %v271 = vunpack.c.l.b16 %v212
        %v272 = vunpack.c.h.b16 %v212
        %v273 = vunpack.c.l.b16 %v213
        %v274 = vunpack.c.h.b16 %v213
        %v275 = vunpack.c.l.b16 %v214
        %v276 = vunpack.c.h.b16 %v214
        %v277 = vunpack.c.l.b16 %v215
        %v278 = vunpack.c.h.b16 %v215
        %v279 = vpack.c.b16 %v265, %v263
        %v280 = vpack.c.b16 %v266, %v264
        %v281 = vpack.c.b16 %v269, %v267
        %v282 = vpack.c.b16 %v270, %v268
        %v283 = vpack.c.b16 %v273, %v271
        %v284 = vpack.c.b16 %v274, %v272
        %v285 = vpack.c.b16 %v277, %v275
        %v286 = vpack.c.b16 %v278, %v276
        %v327 = vunpack.c.l.b16 %v216
        %v328 = vunpack.c.l.b16 %v217
        %v329 = vunpack.c.l.b16 %v218
        %v330 = vunpack.c.l.b16 %v219
        %v331 = vunpack.c.l.b16 %v220
        %v332 = vunpack.c.l.b16 %v221
        %v333 = vunpack.c.l.b16 %v222
        %v334 = vunpack.c.l.b16 %v223
        %v335 = vunpack.c.l.b16 %v224
        %v336 = vunpack.c.l.b16 %v225
        %v337 = vunpack.c.l.b16 %v226
        %v338 = vunpack.c.l.b16 %v227
        %v339 = vunpack.c.l.b16 %v228
        %v340 = vunpack.c.l.b16 %v229
        %v341 = vunpack.c.l.b16 %v230
        %v342 = vunpack.c.l.b16 %v231
        %v343 = vunpack.c.l.b16 %v232
        %v344 = vunpack.c.l.b16 %v233
        %v345 = vunpack.c.l.b16 %v234
        %v346 = vunpack.c.l.b16 %v235
        %v347 = vunpack.c.l.b16 %v236
        %v348 = vunpack.c.l.b16 %v237
        %v349 = vunpack.c.l.b16 %v238
        %v350 = vunpack.c.l.b16 %v239
        %v351 = vunpack.c.l.b16 %v240
        %v352 = vunpack.c.l.b16 %v241
        %v353 = vunpack.c.l.b16 %v242
        %v354 = vunpack.c.l.b16 %v243
        %v355 = vunpack.c.l.b16 %v244
        %v356 = vunpack.c.l.b16 %v245
        %v357 = vunpack.c.l.b16 %v246
        %v358 = vunpack.c.l.b16 %v247
        %v359 = vpack.c.b16 %v328, %v327
        %v360 = vpack.c.b16 %v330, %v329
        %v361 = vpack.c.b16 %v332, %v331
        %v362 = vpack.c.b16 %v334, %v333
        %v363 = vpack.c.b16 %v336, %v335
        %v364 = vpack.c.b16 %v338, %v337
        %v365 = vpack.c.b16 %v340, %v339
        %v366 = vpack.c.b16 %v342, %v341
        %v367 = vpack.c.b16 %v344, %v343
        %v368 = vpack.c.b16 %v346, %v345
        %v369 = vpack.c.b16 %v348, %v347
        %v370 = vpack.c.b16 %v350, %v349
        %v371 = vpack.c.b16 %v352, %v351
        %v372 = vpack.c.b16 %v354, %v353
        %v373 = vpack.c.b16 %v356, %v355
        %v374 = vpack.c.b16 %v358, %v357
        %391 = vmatprep.subr.bf16.mxu0 0
        %392 = vmatpush1.bf16.msra.mxu0 %v366
        %393 = vmatprep.subr.bf16.mxu0 0
        %394 = vmatpush1.bf16.msra.mxu0 %v365
        %395 = vmatprep.subr.bf16.mxu0 0
        %396 = vmatpush1.bf16.msra.mxu0 %v364
        %397 = vmatprep.subr.bf16.mxu0 0
        %398 = vmatpush1.bf16.msra.mxu0 %v363
        %399 = vmatprep.subr.bf16.mxu0 0
        %400 = vmatpush1.bf16.msra.mxu0 %v362
        %401 = vmatprep.subr.bf16.mxu0 0
        %402 = vmatpush1.bf16.msra.mxu0 %v361
        %403 = vmatprep.subr.bf16.mxu0 0
        %404 = vmatpush1.bf16.msra.mxu0 %v360
        %405 = vmatprep.subr.bf16.mxu0 0
        %406 = vmatpush1.bf16.msra.mxu0 %v359
        %407 = vmatprep.subr.bf16.mxu0 0
        %408 = vmatpush2.bf16.msra.mxu0 %v374
        %409 = vmatprep.subr.bf16.mxu0 0
        %410 = vmatpush2.bf16.msra.mxu0 %v373
        %411 = vmatprep.subr.bf16.mxu0 0
        %412 = vmatpush2.bf16.msra.mxu0 %v372
        %413 = vmatprep.subr.bf16.mxu0 0
        %414 = vmatpush2.bf16.msra.mxu0 %v371
        %415 = vmatprep.subr.bf16.mxu0 0
        %416 = vmatpush2.bf16.msra.mxu0 %v370
        %417 = vmatprep.subr.bf16.mxu0 0
        %418 = vmatpush2.bf16.msra.mxu0 %v369
        %419 = vmatprep.subr.bf16.mxu0 0
        %420 = vmatpush2.bf16.msra.mxu0 %v368
        %421 = vmatprep.subr.bf16.mxu0 0
        %422 = vmatpush2.bf16.msra.mxu0 %v367
        %423 = vmatprep.mubr.bf16.mxu0 %v280
        %424 = vmatmul.mubr.bf16.gmra.mxu0 %v279
        %v425 = vpop.f32.mrf.mxu0
        %v426 = vadd.f32 %v253, %v425
        %v427 = vpop.f32.mrf.mxu0
        %v428 = vpop.f32.mrf.mxu0
        %v429 = vadd.f32 %v253, %v428
        %v430 = vpop.f32.mrf.mxu0
        %431 = vmatprep.mubr.bf16.mxu0 %v282
        %432 = vmatmul.mubr.bf16.gmra.mxu0 %v281
        %v433 = vpop.f32.mrf.mxu0
        %v434 = vadd.f32 %v253, %v433
        %v435 = vpop.f32.mrf.mxu0
        %v436 = vpop.f32.mrf.mxu0
        %v437 = vadd.f32 %v253, %v436
        %v438 = vpop.f32.mrf.mxu0
        %439 = vmatprep.mubr.bf16.mxu0 %v284
        %440 = vmatmul.mubr.bf16.gmra.mxu0 %v283
        %v441 = vpop.f32.mrf.mxu0
        %v442 = vadd.f32 %v253, %v441
        %v443 = vpop.f32.mrf.mxu0
        %v444 = vpop.f32.mrf.mxu0
        %v445 = vadd.f32 %v253, %v444
        %v446 = vpop.f32.mrf.mxu0
        %447 = vmatprep.mubr.bf16.mxu0 %v286
        %448 = vmatmul.mubr.bf16.gmra.mxu0 %v285
        %v449 = vpop.f32.mrf.mxu0
        %v450 = vadd.f32 %v253, %v449
        %v451 = vpop.f32.mrf.mxu0
        %v452 = vpop.f32.mrf.mxu0
        %v453 = vadd.f32 %v253, %v452
        %v454 = vpop.f32.mrf.mxu0
        %455 = vdwg.mxu0
        %v456 = vmax.f32 %v426, 0.0
        %v457 = vmax.f32 %v429, 0.0
        %v458 = vmax.f32 %v434, 0.0
        %v459 = vmax.f32 %v437, 0.0
        %v460 = vmax.f32 %v442, 0.0
        %v461 = vmax.f32 %v445, 0.0
        %v462 = vmax.f32 %v450, 0.0
        %v463 = vmax.f32 %v453, 0.0
        %464 = vst [vmem:[%s204] sm:$0xff] %v456
        %465 = vst [vmem:[%s204 + $0x8] sm:$0xff] %v457
        %466 = vst [vmem:[%s204 + $0x10] sm:$0xff] %v458
        %467 = vst [vmem:[%s204 + $0x18] sm:$0xff] %v459
        %468 = vst [vmem:[%s204 + $0x20] sm:$0xff] %v460
        %469 = vst [vmem:[%s204 + $0x28] sm:$0xff] %v461
        %470 = vst [vmem:[%s204 + $0x30] sm:$0xff] %v462
        %471 = vst [vmem:[%s204 + $0x38] sm:$0xff] %v463
        %s472 = sand.u32 %s97, 1
        %s473 = scalar_lea.sflag [#allocation4], %s472
        %s474 = sand.u32 %s97, 1
        %s475 = smul.addr %s474, 64
        %s476 = scalar_lea.vmem [#allocation7], %s475
        // Predicated region
        $region41: #{tpu_custom_call.1} parent=31 // pred_check
          %p477 = pneg %p107
        $region42: #{tpu_custom_call.1} parent=31 // pred_check_branch
          %479 = sbr.rel (%p477) target = $region44
        $region43: #{tpu_custom_call.1} parent=31 // pred_region
          %s480 = smul.u32 8, %s21
          %s482 = ssub.s32 1024, 1024
          %483 = vsyncadd %s473, %s482
          %s484 = smul.addr %s480, 128
          %s485 = scalar_lea.hbm %s3, %s484
          %s486 = sshll.u32 %s476, 4
          %s487 = int_to_ptr.vmem [resolvable:$true] %s486
          %492 = dma.vmem_to_hbm [thread:$0]  %s487, 1024, %s485, %s473, 128, 128, 8
        $region44: #{tpu_custom_call.1} parent=31 // pred_fallthru
          _
      $region32: #{tpu_custom_call.1} parent=5 // pred_fallthru
        _
      %p493 = scmp.le.s32.totalorder 2, %s16
      // Predicated region
      $region45: #{tpu_custom_call.1} parent=5 // pred_check
        %p494 = pneg %p493
      $region46: #{tpu_custom_call.1} parent=5 // pred_check_branch
        %496 = sbr.rel (%p494) target = $region48
      $region47: #{tpu_custom_call.1} parent=5 // pred_region
        %s497 = ssub.s32 %s16, 2
        // Predicated region
        $region49: #{tpu_custom_call.1} parent=47 // pred_check
          %p498 = pneg %p113
        $region50: #{tpu_custom_call.1} parent=47 // pred_check_branch
          %500 = sbr.rel (%p498) target = $region52
        $region51: #{tpu_custom_call.1} parent=47 // pred_region
          %s501 = sand.u32 %s98, 1
          %s502 = scalar_lea.sflag [#allocation4], %s501
          %s503 = sand.u32 %s98, 1
          %s504 = smul.addr %s503, 64
          %s505 = scalar_lea.vmem [#allocation7], %s504
          %506 = dma.done %s502, 1024
        $region52: #{tpu_custom_call.1} parent=47 // pred_fallthru
          _
      $region48: #{tpu_custom_call.1} parent=5 // pred_fallthru
        _
    $region6: #{tpu_custom_call.1} parent=1 // loop_footer
      %s20 = sadd.s32 1, %s16
    $region7: #{tpu_custom_call.1} parent=1 // loop_footer_branch
      %15 = sbr.rel target = $region3
    $region8: #{tpu_custom_call.1} parent=1 // loop_exit
      _
    %507 = vsyncpa [#allocation3], 1
    %s508 = scalar_lea.sflag [#allocation3], 1
    %509 = vsyncpa %s508, 1
    %510 = vsyncpa [#allocation6], 1
    %511 = vsyncpa [#allocation4], 1
    %s512 = scalar_lea.sflag [#allocation4], 1
    %513 = vsyncpa %s512, 1

</llo_original>
